<compile_context>
chip_gen: v7x
topology: tpu7x:2x2x1
jax: 0.10.0
libtpu: 0.0.40
codegen_flags: <defaults>
</compile_context>

<pallas_src>
import functools

import jax
import jax.numpy as jnp
import numpy as np
from jax.experimental import pallas as pl
from jax.experimental.pallas import tpu as pltpu

# ----------------------------- configuration -------------------------------
HIDDEN = 32          # args.hidden_size
FFN_HIDDEN = 64      # mpu.features_per_rank(args)
NUM_EXPERTS = 4      # args.moe_num_experts
TOP_K = 2            # args.moe_top_k
TM = 128             # row tile: fills MXU M dim (128 also fine for v5e 4x128^2)
LANE = 128           # pad hidden / ffn_hidden to lane-dense multiples of 128


def _round_up(v, m):
    return (v + m - 1) // m * m


def _gelu(x):
    # tanh-approximate GELU (EUP-friendly on TPU).
    # TODO(synk): PyTorch F.gelu defaults to the exact erf form; erf lowering in
    # Mosaic is not guaranteed, so the tanh approximation is used here (the
    # in-script reference uses the same form).
    c = jnp.float32(0.7978845608028654)  # sqrt(2/pi)
    return 0.5 * x * (1.0 + jnp.tanh(c * (x + 0.044715 * (x * x * x))))


# ------------------------------ Pallas kernel -------------------------------
def _grouped_mlp_kernel(eids_ref, nblk_ref, x_ref, w1_ref, w2_ref, o_ref):
    # eids_ref: (num_blocks,) int32 in SMEM  -- expert id of each row block
    # nblk_ref: (1,) int32 in SMEM           -- number of real (non-pad) blocks
    # x_ref:    (TM, Hp) bf16                -- rows of one expert group
    # w1_ref:   (E, Hp, Fp) bf16 (VMEM-resident, fetched once)
    # w2_ref:   (E, Fp, Hp) bf16 (VMEM-resident, fetched once)
    # o_ref:    (TM, Hp) f32
    b = pl.program_id(0)

    @pl.when(b < nblk_ref[0])
    def _():
        e = eids_ref[b]
        x = x_ref[...]
        h = jnp.dot(x, w1_ref[e], preferred_element_type=jnp.float32)
        h = _gelu(h)                                    # f32 VPU/EUP path
        o_ref[...] = jnp.dot(h.astype(jnp.bfloat16), w2_ref[e],
                             preferred_element_type=jnp.float32)


def grouped_mlp(x_packed, block_expert, n_real, w1p, w2p):
    """x_packed: (num_blocks*TM, Hp) bf16; block_expert: (num_blocks,) int32;
    n_real: (1,) int32; w1p: (E, Hp, Fp) bf16; w2p: (E, Fp, Hp) bf16."""
    num_blocks = block_expert.shape[0]
    R, Hp = x_packed.shape
    E, _, Fp = w1p.shape
    return pl.pallas_call(
        _grouped_mlp_kernel,
        out_shape=jax.ShapeDtypeStruct((R, Hp), jnp.float32),
        grid_spec=pltpu.PrefetchScalarGridSpec(
            num_scalar_prefetch=2,
            grid=(num_blocks,),
            in_specs=[
                pl.BlockSpec((TM, Hp), lambda b, eids, nblk: (b, 0)),
                # Whole weight tensors resident in VMEM (block index never
                # changes -> fetched once, no per-step expert-slice DMA).
                # TODO(synk): for production H/F (e.g. 4k/16k) these no longer
                # fit v7x's 64 MiB VMEM; add a K/F grid axis + f32 accumulator.
                pl.BlockSpec((E, Hp, Fp), lambda b, eids, nblk: (0, 0, 0)),
                pl.BlockSpec((E, Fp, Hp), lambda b, eids, nblk: (0, 0, 0)),
            ],
            out_specs=pl.BlockSpec((TM, Hp), lambda b, eids, nblk: (b, 0)),
        ),
        compiler_params=pltpu.CompilerParams(
            dimension_semantics=("parallel",)),   # blocks independent (v7x 2 TCs)
    )(block_expert, n_real, x_packed, w1p, w2p)


# ------------------------------- forward glue --------------------------------
@jax.jit
def grouped_batched_experts_forward(x, scores, expert_weights, top_experts,
                                    w1, w2, bias):
    del scores  # only used for the load-balancing loss in training mode
    in_shape = x.shape
    H = in_shape[-1]
    E, _, F = w1.shape
    Hp = max(_round_up(H, LANE), LANE)
    Fp = max(_round_up(F, LANE), LANE)

    x_flat = x.reshape(-1, H).astype(jnp.float32)              # (T, H)
    T = x_flat.shape[0]
    K = top_experts.shape[-1]
    A = T * K                                                  # assignments

    flat_experts = top_experts.reshape(-1).astype(jnp.int32)   # (A,)
    flat_weights = expert_weights.reshape(-1).astype(jnp.float32)

    # indices_and_bins: stable sort by expert, histogram, cumsums (no scatter)
    order = jnp.argsort(flat_experts, stable=True)             # indices
    sorted_experts = flat_experts[order]                       # bin_ids
    inv = jnp.argsort(order)                                   # unsort permutation
    tokens_per_expert = jnp.sum(
        (flat_experts[None, :] == jnp.arange(E, dtype=jnp.int32)[:, None])
        .astype(jnp.int32), axis=1)
    bins = jnp.cumsum(tokens_per_expert)                       # inclusive
    bins_excl = bins - tokens_per_expert

    # block-aligned packing: each expert's rows start on a TM boundary
    blocks_per_expert = (tokens_per_expert + TM - 1) // TM
    cum_blocks = jnp.cumsum(blocks_per_expert)
    block_start = cum_blocks - blocks_per_expert               # in blocks
    n_real = cum_blocks[-1:].astype(jnp.int32)                 # (1,) real blocks

    num_blocks_max = (A + TM - 1) // TM + E                    # static bound
    R = num_blocks_max * TM

    block_ids = jnp.arange(num_blocks_max, dtype=jnp.int32)
    block_expert = jnp.clip(
        jnp.searchsorted(cum_blocks, block_ids, side="right"),
        0, E - 1).astype(jnp.int32)

    # Gather-based packing: per padded row, compute the source token row
    # analytically (pad rows point at a zero sentinel) -> single dense gather.
    p = jnp.arange(R, dtype=jnp.int32)
    blk = p // TM
    within = p % TM
    e_row = block_expert[blk]
    rank = (blk - block_start[e_row]) * TM + within
    valid = (blk < n_real[0]) & (rank < tokens_per_expert[e_row])
    sorted_idx = jnp.clip(bins_excl[e_row] + rank, 0, A - 1)
    src_tok = order[sorted_idx] // K
    src_row = jnp.where(valid, src_tok, T)                     # T -> zeros row

    x_ext = jnp.concatenate([x_flat, jnp.zeros((1, H), jnp.float32)], axis=0)
    x_ext = jnp.pad(x_ext, ((0, 0), (0, Hp - H)))
    x_packed = x_ext[src_row].astype(jnp.bfloat16)             # (R, Hp) bf16

    # Lane-dense, bf16 expert weights (zero padding is exact: gelu(0)=0).
    w1p = jnp.pad(w1.astype(jnp.float32),
                  ((0, 0), (0, Hp - H), (0, Fp - F))).astype(jnp.bfloat16)
    w2p = jnp.pad(w2.astype(jnp.float32),
                  ((0, 0), (0, Fp - F), (0, Hp - H))).astype(jnp.bfloat16)

    # grouped batched expert MLP (Pallas hot path)
    y_packed = grouped_mlp(x_packed, block_expert, n_real, w1p, w2p)  # (R, Hp) f32

    # Combine: gather each (token, k) expert output row, weight, dense-sum
    # over K (no scatter-add).
    padded_pos = (block_start[sorted_experts] * TM
                  + (jnp.arange(A, dtype=jnp.int32) - bins_excl[sorted_experts]))
    row_table = padded_pos[inv]                                # per flat assignment
    y_rows = y_packed[row_table][:, :H].reshape(T, K, H)
    out = jnp.sum(flat_weights.reshape(T, K, 1) * y_rows, axis=1)

    out = out.reshape(in_shape)
    return out + bias                                          # args.bias path

    # TODO(synk): training-time save_load_balancing_loss((tokens_per_expert,
    # scores)) is host-side bookkeeping with no kernel equivalent; omitted.


# ------------------------------- reference -----------------------------------
def reference_forward(x, expert_weights, top_experts, w1, w2, bias):
    in_shape = x.shape
    H = in_shape[-1]
    xf = x.reshape(-1, H).astype(jnp.float32)                  # (T, H)
    h = _gelu(jnp.einsum("th,ehf->tef", xf, w1))               # (T, E, F)
    y = jnp.einsum("tef,efh->teh", h, w2)                      # (T, E, H)
    sel = jnp.take_along_axis(y, top_experts[..., None], axis=1)  # (T, K, H)
    out = jnp.sum(expert_weights[..., None] * sel, axis=1)
    return out.reshape(in_shape) + bias


# --------------------------------- main ---------------------------------------
if __name__ == "__main__":
    key = jax.random.PRNGKey(0)
    k_x, k_w1, k_w2, k_te, k_ew = jax.random.split(key, 5)

    batch, seq = 2, 8
    T = batch * seq

    x = jax.random.normal(k_x, (batch, seq, HIDDEN), jnp.float32)
    w1 = 0.02 * jax.random.normal(k_w1, (NUM_EXPERTS, HIDDEN, FFN_HIDDEN),
                                  jnp.float32)
    w2 = 0.02 * jax.random.normal(k_w2, (NUM_EXPERTS, FFN_HIDDEN, HIDDEN),
                                  jnp.float32)
    bias = jnp.zeros((HIDDEN,), jnp.float32)          # torch.nn.init.zeros_

    top_experts = jax.random.randint(k_te, (T, TOP_K), 0, NUM_EXPERTS, jnp.int32)
    raw_w = jax.random.uniform(k_ew, (T, TOP_K), jnp.float32)
    expert_weights = raw_w / jnp.sum(raw_w, axis=-1, keepdims=True)
    scores = jnp.zeros((T, NUM_EXPERTS), jnp.float32)  # unused in eval forward

    out = grouped_batched_experts_forward(
        x, scores, expert_weights, top_experts, w1, w2, bias)
    out = jax.block_until_ready(out)

    ref = reference_forward(x, expert_weights, top_experts, w1, w2, bias)
    # bf16 MXU operands (f32 accumulate) -> looser tolerance than pure f32.
    np.testing.assert_allclose(np.asarray(out), np.asarray(ref),
                               rtol=2e-2, atol=2e-3)
    print("KERNEL_OK")
</pallas_src>

<mosaic_0001>
module attributes {stable_mosaic.version = 11 : i64} {
  func.func @_grouped_mlp_kernel(%arg0: i32, %arg1: memref<5xi32, #tpu.memory_space<smem>>, %arg2: memref<1xi32, #tpu.memory_space<smem>>, %arg3: memref<128x128xbf16, #tpu.memory_space<vmem>>, %arg4: memref<4x128x128xbf16, #tpu.memory_space<vmem>>, %arg5: memref<4x128x128xbf16, #tpu.memory_space<vmem>>, %arg6: memref<128x128xf32, #tpu.memory_space<vmem>>) attributes {dimension_semantics = [#tpu.dimension_semantics<parallel>], iteration_bounds = array<i64: 5>, scalar_prefetch = 2 : i64, scratch_operands = 0 : i64, tpu.core_type = #tpu.core_type<tc>, window_params = [{transform_indices = @transform_0, window_bounds = array<i64: 128, 128>}, {pipeline_mode = #tpu.pipeline_mode<synchronous>, transform_indices = @transform_1, window_bounds = array<i64: 4, 128, 128>}, {pipeline_mode = #tpu.pipeline_mode<synchronous>, transform_indices = @transform_2, window_bounds = array<i64: 4, 128, 128>}, {transform_indices = @transform_3, window_bounds = array<i64: 128, 128>}]} {
    %c0 = arith.constant 0 : index
    %0 = memref.load %arg2[%c0] : memref<1xi32, #tpu.memory_space<smem>>
    %1 = arith.cmpi slt, %arg0, %0 : i32
    %2 = arith.extui %1 : i1 to i32
    %c0_i32 = arith.constant 0 : i32
    %3 = arith.cmpi ne, %2, %c0_i32 : i32
    scf.if %3 {
      %4 = arith.index_cast %arg0 : i32 to index
      %5 = memref.load %arg1[%4] : memref<5xi32, #tpu.memory_space<smem>>
      %c0_0 = arith.constant 0 : index
      %c0_1 = arith.constant 0 : index
      %6 = vector.load %arg3[%c0_0, %c0_1] : memref<128x128xbf16, #tpu.memory_space<vmem>>, vector<128x128xbf16>
      %7 = arith.index_cast %5 : i32 to index
      %c0_2 = arith.constant 0 : index
      %c0_3 = arith.constant 0 : index
      %8 = vector.load %arg4[%7, %c0_2, %c0_3] : memref<4x128x128xbf16, #tpu.memory_space<vmem>>, vector<1x128x128xbf16>
      %9 = vector.shape_cast %8 : vector<1x128x128xbf16> to vector<128x128xbf16>
      %cst = arith.constant dense<0.000000e+00> : vector<128x128xf32>
      %10 = tpu.matmul %6, %9, %cst {dimension_numbers = #tpu.dot_dimension_numbers<[1], [0], [0], [1], [0, 0, 1, 1], [], []>} : vector<128x128xbf16>, vector<128x128xbf16>, vector<128x128xf32> -> vector<128x128xf32>
      %cst_4 = arith.constant 5.000000e-01 : f32
      %11 = vector.broadcast %cst_4 : f32 to vector<128x128xf32>
      %12 = arith.mulf %11, %10 : vector<128x128xf32>
      %13 = arith.mulf %10, %10 : vector<128x128xf32>
      %14 = arith.mulf %13, %10 : vector<128x128xf32>
      %cst_5 = arith.constant 4.471500e-02 : f32
      %15 = vector.broadcast %cst_5 : f32 to vector<128x128xf32>
      %16 = arith.mulf %15, %14 : vector<128x128xf32>
      %17 = arith.addf %10, %16 : vector<128x128xf32>
      %cst_6 = arith.constant 0.797884583 : f32
      %18 = vector.broadcast %cst_6 : f32 to vector<128x128xf32>
      %19 = arith.mulf %18, %17 : vector<128x128xf32>
      %20 = math.tanh %19 : vector<128x128xf32>
      %cst_7 = arith.constant 1.000000e+00 : f32
      %21 = vector.broadcast %cst_7 : f32 to vector<128x128xf32>
      %22 = arith.addf %21, %20 : vector<128x128xf32>
      %23 = arith.mulf %12, %22 : vector<128x128xf32>
      %24 = arith.truncf %23 : vector<128x128xf32> to vector<128x128xbf16>
      %25 = arith.index_cast %5 : i32 to index
      %c0_8 = arith.constant 0 : index
      %c0_9 = arith.constant 0 : index
      %26 = vector.load %arg5[%25, %c0_8, %c0_9] : memref<4x128x128xbf16, #tpu.memory_space<vmem>>, vector<1x128x128xbf16>
      %27 = vector.shape_cast %26 : vector<1x128x128xbf16> to vector<128x128xbf16>
      %cst_10 = arith.constant dense<0.000000e+00> : vector<128x128xf32>
      %28 = tpu.matmul %24, %27, %cst_10 {dimension_numbers = #tpu.dot_dimension_numbers<[1], [0], [0], [1], [0, 0, 1, 1], [], []>} : vector<128x128xbf16>, vector<128x128xbf16>, vector<128x128xf32> -> vector<128x128xf32>
      %c0_11 = arith.constant 0 : index
      %c0_12 = arith.constant 0 : index
      %29 = vector.load %arg6[%c0_11, %c0_12] : memref<128x128xf32, #tpu.memory_space<vmem>>, vector<128x128xf32>
      tpu.vector_store %arg6[%c0_11, %c0_12], %28 {strides = array<i32>} : memref<128x128xf32, #tpu.memory_space<vmem>>, vector<128x128xf32>,
    } else {
    }
    return
  }
  func.func @transform_0(%arg0: i32, %arg1: memref<5xi32, #tpu.memory_space<smem>>, %arg2: memref<1xi32, #tpu.memory_space<smem>>) -> (i32, i32) {
    %c0_i32 = arith.constant 0 : i32
    %c0_i32_0 = arith.constant 0 : i32
    return %arg0, %c0_i32 : i32, i32
  }
  func.func @transform_1(%arg0: i32, %arg1: memref<5xi32, #tpu.memory_space<smem>>, %arg2: memref<1xi32, #tpu.memory_space<smem>>) -> (i32, i32, i32) {
    %c0_i32 = arith.constant 0 : i32
    %c0_i32_0 = arith.constant 0 : i32
    %c0_i32_1 = arith.constant 0 : i32
    %c0_i32_2 = arith.constant 0 : i32
    return %c0_i32, %c0_i32_0, %c0_i32_1 : i32, i32, i32
  }
  func.func @transform_2(%arg0: i32, %arg1: memref<5xi32, #tpu.memory_space<smem>>, %arg2: memref<1xi32, #tpu.memory_space<smem>>) -> (i32, i32, i32) {
    %c0_i32 = arith.constant 0 : i32
    %c0_i32_0 = arith.constant 0 : i32
    %c0_i32_1 = arith.constant 0 : i32
    %c0_i32_2 = arith.constant 0 : i32
    return %c0_i32, %c0_i32_0, %c0_i32_1 : i32, i32, i32
  }
  func.func @transform_3(%arg0: i32, %arg1: memref<5xi32, #tpu.memory_space<smem>>, %arg2: memref<1xi32, #tpu.memory_space<smem>>) -> (i32, i32) {
    %c0_i32 = arith.constant 0 : i32
    %c0_i32_0 = arith.constant 0 : i32
    return %arg0, %c0_i32 : i32, i32
  }
}

</mosaic_0001>

<llo_original>
// kernel: eq.10
$region0: #{eq.10}
  %s0 = inlined_call_operand.vmem [shape: s32[16,2], index: 0, kind: input, shape index: {}]
  %s1 = inlined_call_operand.vmem [shape: s32[32], index: 1, kind: output, shape index: {}]
  $region1: #{eq.10} parent=0
    #allocation0 [shape = 'u8[4096]{0}', space=vmem, size = 0x1000, scoped, tag = 'scoped mem for output reshape']
    %v2 = vld [vmem:[%s0] sm:$0x1]
    %vm3 = vcmask 15360
    %4 = vst.msk [vmem:[#allocation0] sm:$0x1] %vm3, %v2
    %s5 = scalar_lea.vmem %s0, 15
    %v6 = vld [vmem:[%s5] sm:$0x1]
    %7 = vrot.lane.b32.xlu0 %v6, 30
    %v8 = vpop.permute.xlu0 %7
    %vm9 = vcmask 261360
    %10 = vst.msk [vmem:[#allocation0] sm:$0x1] %vm9, %v8
    %s11 = scalar_lea.vmem %s0, 14
    %v12 = vld [vmem:[%s11] sm:$0x1]
    %13 = vrot.lane.b32.xlu0 %v12, 28
    %v14 = vpop.permute.xlu0 %13
    %vm15 = vcmask 244960
    %16 = vst.msk [vmem:[#allocation0] sm:$0x1] %vm15, %v14
    %s17 = scalar_lea.vmem %s0, 13
    %v18 = vld [vmem:[%s17] sm:$0x1]
    %19 = vrot.lane.b32.xlu0 %v18, 26
    %v20 = vpop.permute.xlu0 %19
    %vm21 = vcmask 228560
    %22 = vst.msk [vmem:[#allocation0] sm:$0x1] %vm21, %v20
    %s23 = scalar_lea.vmem %s0, 12
    %v24 = vld [vmem:[%s23] sm:$0x1]
    %25 = vrot.lane.b32.xlu0 %v24, 24
    %v26 = vpop.permute.xlu0 %25
    %vm27 = vcmask 212160
    %28 = vst.msk [vmem:[#allocation0] sm:$0x1] %vm27, %v26
    %s29 = scalar_lea.vmem %s0, 11
    %v30 = vld [vmem:[%s29] sm:$0x1]
    %31 = vrot.lane.b32.xlu0 %v30, 22
    %v32 = vpop.permute.xlu0 %31
    %vm33 = vcmask 195760
    %34 = vst.msk [vmem:[#allocation0] sm:$0x1] %vm33, %v32
    %s35 = scalar_lea.vmem %s0, 10
    %v36 = vld [vmem:[%s35] sm:$0x1]
    %37 = vrot.lane.b32.xlu0 %v36, 20
    %v38 = vpop.permute.xlu0 %37
    %vm39 = vcmask 179360
    %40 = vst.msk [vmem:[#allocation0] sm:$0x1] %vm39, %v38
    %s41 = scalar_lea.vmem %s0, 9
    %v42 = vld [vmem:[%s41] sm:$0x1]
    %43 = vrot.lane.b32.xlu0 %v42, 18
    %v44 = vpop.permute.xlu0 %43
    %vm45 = vcmask 162960
    %46 = vst.msk [vmem:[#allocation0] sm:$0x1] %vm45, %v44
    %s47 = scalar_lea.vmem %s0, 8
    %v48 = vld [vmem:[%s47] sm:$0x1]
    %49 = vrot.lane.b32.xlu0 %v48, 16
    %v50 = vpop.permute.xlu0 %49
    %vm51 = vcmask 146560
    %52 = vst.msk [vmem:[#allocation0] sm:$0x1] %vm51, %v50
    %s53 = scalar_lea.vmem %s0, 7
    %v54 = vld [vmem:[%s53] sm:$0x1]
    %55 = vrot.lane.b32.xlu0 %v54, 14
    %v56 = vpop.permute.xlu0 %55
    %vm57 = vcmask 130160
    %58 = vst.msk [vmem:[#allocation0] sm:$0x1] %vm57, %v56
    %s59 = scalar_lea.vmem %s0, 6
    %v60 = vld [vmem:[%s59] sm:$0x1]
    %61 = vrot.lane.b32.xlu0 %v60, 12
    %v62 = vpop.permute.xlu0 %61
    %vm63 = vcmask 113760
    %64 = vst.msk [vmem:[#allocation0] sm:$0x1] %vm63, %v62
    %s65 = scalar_lea.vmem %s0, 5
    %v66 = vld [vmem:[%s65] sm:$0x1]
    %67 = vrot.lane.b32.xlu0 %v66, 10
    %v68 = vpop.permute.xlu0 %67
    %vm69 = vcmask 97360
    %70 = vst.msk [vmem:[#allocation0] sm:$0x1] %vm69, %v68
    %s71 = scalar_lea.vmem %s0, 4
    %v72 = vld [vmem:[%s71] sm:$0x1]
    %73 = vrot.lane.b32.xlu0 %v72, 8
    %v74 = vpop.permute.xlu0 %73
    %vm75 = vcmask 80960
    %76 = vst.msk [vmem:[#allocation0] sm:$0x1] %vm75, %v74
    %s77 = scalar_lea.vmem %s0, 3
    %v78 = vld [vmem:[%s77] sm:$0x1]
    %79 = vrot.lane.b32.xlu0 %v78, 6
    %v80 = vpop.permute.xlu0 %79
    %vm81 = vcmask 64560
    %82 = vst.msk [vmem:[#allocation0] sm:$0x1] %vm81, %v80
    %s83 = scalar_lea.vmem %s0, 2
    %v84 = vld [vmem:[%s83] sm:$0x1]
    %85 = vrot.lane.b32.xlu0 %v84, 4
    %v86 = vpop.permute.xlu0 %85
    %vm87 = vcmask 48160
    %88 = vst.msk [vmem:[#allocation0] sm:$0x1] %vm87, %v86
    %s89 = scalar_lea.vmem %s0, 1
    %v90 = vld [vmem:[%s89] sm:$0x1]
    %91 = vrot.lane.b32.xlu0 %v90, 2
    %v92 = vpop.permute.xlu0 %91
    %vm93 = vcmask 31760
    %94 = vst.msk [vmem:[#allocation0] sm:$0x1] %vm93, %v92
    %s96 = sshllo.u32 0, 1
    %v98 = vld [vmem:[#allocation0] sm:%s96]
    %s99 = sshllo.u32 0, 1
    %100 = vst [vmem:[%s1] sm:%s99] %v98

// kernel: custom-call
$region0: #{custom-call}
  %s0 = inlined_call_operand.vmem [shape: u32[5], index: 0, kind: output, shape index: {}]

// kernel: grouped_batched_experts_forward.1
$region0: #{grouped_batched_experts_forward.1}
  #allocation0 [shape = 'u32[]', space=smem, size = 0x4, offset = 0x4, fixed_abs, tag = 'smem constant byte address 0x4 - core index']
  #allocation1 [shape = 'u32[144,128]{1,0:T(1,128)}', space=vmem, size = 0x12000, scoped, tag = 'internal scratch']
  #allocation2 [shape = 's32[1]{0}', space=sflag, size = 0x4, scoped, tag = 'scoped memory for grouped_batched_experts_forward.1']
  #allocation3 [shape = 'u8[512]{0}', space=smem, size = 0x200, scoped, tag = 'prefetched SMEM operand 0']
  #allocation4 [shape = 's32[1]{0:T(128)S(6)}', space=smem, size = 0x200, scoped, tag = 'prefetched SMEM operand 1']
  %s0 = inlined_call_operand.vmem [shape: s32[5], index: 0, kind: input, shape index: {}]
  %s1 = inlined_call_operand.<no memory space> [shape: s32[1], index: 1, kind: input, shape index: {}]
  %s2 = inlined_call_operand.vmem [shape: bf16[640,128], index: 2, kind: input, shape index: {}]
  %s3 = inlined_call_operand.vmem [shape: bf16[4,128,128], index: 3, kind: input, shape index: {}]
  %s4 = inlined_call_operand.vmem [shape: bf16[4,128,128], index: 4, kind: input, shape index: {}]
  %s5 = inlined_call_operand.vmem [shape: f32[640,128], index: 5, kind: output, shape index: {}]
  %s6 = sld [smem:[#allocation0]]
  $region49: #{grouped_batched_experts_forward.1} parent=0
    _
  %s8 = ssub.s32 1, %s6
  %s9 = scalar_select 0, %s8, %s6
  %s10 = sshll.u32 %s0, 4
  %s11 = int_to_ptr.vmem [resolvable:$true] %s10
  %13 = dma.vmem_to_smem %s11, 16, [#allocation3], [#allocation2]
  %14 = sst [smem:[#allocation4]] %s1
  %15 = dma.done [#allocation2], 16
  %16 = sfence
  loop: start=0, step=1, limit=7
  $region2: #{grouped_batched_experts_forward.1} parent=0 // loop_pre_header
    _
  $region3: #{grouped_batched_experts_forward.1} parent=0 // loop_header
    %s18 = sphi 0, %s22
    %p19 = scmp.ge.s32.totalorder %s18, 7
    %s28 = sphi 0, %s30
    %s31 = sphi 0, %s28
    %s32 = sphi 0, %s31
    %s48 = sphi 0, %s32
    %s52 = sphi 0, %s52
    %s54 = sphi 0, %s52
    %s55 = sphi 0, %s54
    %s69 = sphi 0, %s55
    %s73 = sphi 0, %s73
    %s75 = sphi 0, %s73
    %s76 = sphi 0, %s75
    %s90 = sphi 0, %s76
    %s96 = sphi 0, %s98
    %s99 = sphi 0, %s96
    %s100 = sphi 0, %s99
    %s116 = sphi 0, %s100
  $region4: #{grouped_batched_experts_forward.1} parent=0 // loop_header_branch
    %21 = sbr.rel (%p19) target = $region8
  $region5: #{grouped_batched_experts_forward.1} parent=0 // loop_body
    %s23 = ssub.s32 %s18, 1
    %s24 = ssub.s32 %s18, 2
    %s25 = sadd.s32 %s18, 1
    %s26 = ssub.s32 %s18, %s25
    %p27 = scmp.eq.s32.totalorder %s26, 0
    %s29 = sadd.s32 %s28, 1
    %s30 = scalar_select %p27, %s28, %s29
    %p33 = pneg %p27
    %p34 = scmp.eq.s32.totalorder %s18, 4
    %p35 = por %p33, %p34
    %p36 = scmp.ne.s32.totalorder %s28, %s31
    %p37 = scmp.eq.s32.totalorder %s18, 0
    %p38 = por %p36, %p37
    %p39 = scmp.ne.s32.totalorder %s28, %s31
    %p40 = scmp.eq.s32.totalorder %s23, 4
    %p41 = por %p39, %p40
    %p42 = scmp.ne.s32.totalorder %s31, %s32
    %p43 = scmp.eq.s32.totalorder %s23, 0
    %p44 = por %p42, %p43
    %p45 = scmp.ne.s32.totalorder %s31, %s32
    %p46 = scmp.eq.s32.totalorder %s24, 4
    %p47 = por %p45, %p46
    %p49 = scmp.ne.s32.totalorder %s32, %s48
    %p50 = scmp.eq.s32.totalorder %s24, 0
    %p51 = por %p49, %p50
    %s53 = sadd.s32 %s52, 1
    %p56 = scmp.eq.s32.totalorder %s18, 4
    %p57 = scmp.ne.s32.totalorder %s52, %s54
    %p58 = scmp.eq.s32.totalorder %s18, 0
    %p59 = por %p57, %p58
    %p60 = scmp.ne.s32.totalorder %s52, %s54
    %p61 = scmp.eq.s32.totalorder %s23, 4
    %p62 = por %p60, %p61
    %p63 = scmp.ne.s32.totalorder %s54, %s55
    %p64 = scmp.eq.s32.totalorder %s23, 0
    %p65 = por %p63, %p64
    %p66 = scmp.ne.s32.totalorder %s54, %s55
    %p67 = scmp.eq.s32.totalorder %s24, 4
    %p68 = por %p66, %p67
    %p70 = scmp.ne.s32.totalorder %s55, %s69
    %p71 = scmp.eq.s32.totalorder %s24, 0
    %p72 = por %p70, %p71
    %s74 = sadd.s32 %s73, 1
    %p77 = scmp.eq.s32.totalorder %s18, 4
    %p78 = scmp.ne.s32.totalorder %s73, %s75
    %p79 = scmp.eq.s32.totalorder %s18, 0
    %p80 = por %p78, %p79
    %p81 = scmp.ne.s32.totalorder %s73, %s75
    %p82 = scmp.eq.s32.totalorder %s23, 4
    %p83 = por %p81, %p82
    %p84 = scmp.ne.s32.totalorder %s75, %s76
    %p85 = scmp.eq.s32.totalorder %s23, 0
    %p86 = por %p84, %p85
    %p87 = scmp.ne.s32.totalorder %s75, %s76
    %p88 = scmp.eq.s32.totalorder %s24, 4
    %p89 = por %p87, %p88
    %p91 = scmp.ne.s32.totalorder %s76, %s90
    %p92 = scmp.eq.s32.totalorder %s24, 0
    %p93 = por %p91, %p92
    %s94 = ssub.s32 %s18, %s25
    %p95 = scmp.eq.s32.totalorder %s94, 0
    %s97 = sadd.s32 %s96, 1
    %s98 = scalar_select %p95, %s96, %s97
    %p101 = pneg %p95
    %p102 = scmp.eq.s32.totalorder %s18, 4
    %p103 = por %p101, %p102
    %p104 = scmp.ne.s32.totalorder %s96, %s99
    %p105 = scmp.eq.s32.totalorder %s18, 0
    %p106 = por %p104, %p105
    %p107 = scmp.ne.s32.totalorder %s96, %s99
    %p108 = scmp.eq.s32.totalorder %s23, 4
    %p109 = por %p107, %p108
    %p110 = scmp.ne.s32.totalorder %s99, %s100
    %p111 = scmp.eq.s32.totalorder %s23, 0
    %p112 = por %p110, %p111
    %p113 = scmp.ne.s32.totalorder %s99, %s100
    %p114 = scmp.eq.s32.totalorder %s24, 4
    %p115 = por %p113, %p114
    %p117 = scmp.ne.s32.totalorder %s100, %s116
    %p118 = scmp.eq.s32.totalorder %s24, 0
    %p119 = por %p117, %p118
    %p120 = scmp.le.s32.totalorder 1, %s18
    %p121 = scmp.lt.s32.totalorder %s18, 6
    %p122 = pnand %p120, %p121
    %p123 = pneg %p122
    // Predicated region
    $region9: #{grouped_batched_experts_forward.1} parent=5 // pred_check
      _
    $region10: #{grouped_batched_experts_forward.1} parent=5 // pred_check_branch
      %125 = sbr.rel (%p122) target = $region12
    $region11: #{grouped_batched_experts_forward.1} parent=5 // pred_region
      %s126 = ssub.s32 %s18, 1
      // Predicated region
      $region13: #{grouped_batched_experts_forward.1} parent=11 // pred_check
        %p127 = pneg %p65
      $region14: #{grouped_batched_experts_forward.1} parent=11 // pred_check_branch
        %129 = sbr.rel (%p127) target = $region16
      $region15: #{grouped_batched_experts_forward.1} parent=11 // pred_region
        _
      $region16: #{grouped_batched_experts_forward.1} parent=11 // pred_fallthru
        _
      // Predicated region
      $region17: #{grouped_batched_experts_forward.1} parent=11 // pred_check
        %p130 = pneg %p86
      $region18: #{grouped_batched_experts_forward.1} parent=11 // pred_check_branch
        %132 = sbr.rel (%p130) target = $region20
      $region19: #{grouped_batched_experts_forward.1} parent=11 // pred_region
        _
      $region20: #{grouped_batched_experts_forward.1} parent=11 // pred_fallthru
        _
    $region12: #{grouped_batched_experts_forward.1} parent=5 // pred_fallthru
      _
    %p133 = scmp.lt.s32.totalorder %s18, 5
    // Predicated region
    $region21: #{grouped_batched_experts_forward.1} parent=5 // pred_check
      %p134 = pneg %p133
    $region22: #{grouped_batched_experts_forward.1} parent=5 // pred_check_branch
      %136 = sbr.rel (%p134) target = $region24
    $region23: #{grouped_batched_experts_forward.1} parent=5 // pred_region
      // Predicated region
      $region25: #{grouped_batched_experts_forward.1} parent=23 // pred_check
        %p137 = pneg %p38
      $region26: #{grouped_batched_experts_forward.1} parent=23 // pred_check_branch
        %139 = sbr.rel (%p137) target = $region28
      $region27: #{grouped_batched_experts_forward.1} parent=23 // pred_region
        %s140 = smul.u32 16, %s18
        %p141 = scmp.lt.s32.totalorder %s140, 79
        %s142 = scalar_select %p141, %s140, 79
        %s143 = smul.addr %s142, 4
        %s144 = scalar_lea.vmem %s2, %s143
        %s145 = smul.u32 16, %s18
      $region28: #{grouped_batched_experts_forward.1} parent=23 // pred_fallthru
        _
    $region24: #{grouped_batched_experts_forward.1} parent=5 // pred_fallthru
      _
    %p146 = scmp.le.s32.totalorder 1, %s18
    %p147 = scmp.lt.s32.totalorder %s18, 6
    %p148 = pnand %p146, %p147
    %p149 = pneg %p148
    // Predicated region
    $region29: #{grouped_batched_experts_forward.1} parent=5 // pred_check
      _
    $region30: #{grouped_batched_experts_forward.1} parent=5 // pred_check_branch
      %151 = sbr.rel (%p148) target = $region32
    $region31: #{grouped_batched_experts_forward.1} parent=5 // pred_region
      %s152 = ssub.s32 %s18, 1
      %s153 = smul.u32 16, %s23
      %p154 = scmp.lt.s32.totalorder %s153, 79
      %s155 = scalar_select %p154, %s153, 79
      %s156 = smul.addr %s155, 4
      %s157 = scalar_lea.vmem %s2, %s156
      %p158 = pneg %p44
      %p159 = pneg %p41
      %p160 = pneg %p65
      %p161 = pneg %p62
      %p162 = pneg %p86
      %p163 = pneg %p83
      %p164 = pneg %p112
      %p165 = pneg %p109
      %s166 = smul.u32 16, %s23
      %p167 = scmp.lt.s32.totalorder %s166, 79
      %s168 = scalar_select %p167, %s166, 79
      %s169 = smul.addr %s168, 8
      %s170 = scalar_lea.vmem %s5, %s169
      %s171 = smul.u32 16, %s23
      %p172 = scmp.lt.s32.totalorder %s171, 79
      %s173 = scalar_select %p172, %s171, 79
      %s174 = smul.addr %s173, 4
      %s175 = scalar_lea.vmem %s2, %s174
      %s176 = smul.u32 16, %s23
      %s177 = smul.u32 16, %s23
      %p178 = scmp.lt.s32.totalorder %s177, 79
      %s179 = scalar_select %p178, %s177, 79
      %s180 = smul.addr %s179, 8
      %s181 = scalar_lea.vmem %s5, %s180
      %s182 = smul.u32 16, %s23
      %s184 = sld [smem:[#allocation4]]
      %p185 = scmp.lt.s32.totalorder %s23, %s184
      // Predicated region
      $region33: #{grouped_batched_experts_forward.1} parent=31 // pred_check
        %p186 = pneg %p185
      $region34: #{grouped_batched_experts_forward.1} parent=31 // pred_check_branch
        %188 = sbr.rel (%p186) target = $region36
      $region35: #{grouped_batched_experts_forward.1} parent=31 // pred_region
        %s189 = sld [smem:[#allocation3 + %s23]]
        %v190 = vld [vmem:[%s175] sm:$0xf]
        %v191 = vld [vmem:[%s175 + $0x4] sm:$0xf]
        %v192 = vld [vmem:[%s175 + $0x8] sm:$0xf]
        %v193 = vld [vmem:[%s175 + $0xc] sm:$0xf]
        %v194 = vld [vmem:[%s175 + $0x10] sm:$0xf]
        %v195 = vld [vmem:[%s175 + $0x14] sm:$0xf]
        %v196 = vld [vmem:[%s175 + $0x18] sm:$0xf]
        %v197 = vld [vmem:[%s175 + $0x1c] sm:$0xf]
        %v198 = vld [vmem:[%s175 + $0x20] sm:$0xf]
        %v199 = vld [vmem:[%s175 + $0x24] sm:$0xf]
        %v200 = vld [vmem:[%s175 + $0x28] sm:$0xf]
        %v201 = vld [vmem:[%s175 + $0x2c] sm:$0xf]
        %v202 = vld [vmem:[%s175 + $0x30] sm:$0xf]
        %v203 = vld [vmem:[%s175 + $0x34] sm:$0xf]
        %v204 = vld [vmem:[%s175 + $0x38] sm:$0xf]
        %v205 = vld [vmem:[%s175 + $0x3c] sm:$0xf]
        %s206 = smul.u32 %s189, 16
        %s207 = smul.addr %s206, 4
        %s208 = scalar_lea.vmem %s3, %s207
        %v209 = vld [vmem:[%s208] sm:$0xf]
        %v210 = vld [vmem:[%s208 + $0x4] sm:$0xf]
        %v211 = vld [vmem:[%s208 + $0x8] sm:$0xf]
        %v212 = vld [vmem:[%s208 + $0xc] sm:$0xf]
        %v213 = vld [vmem:[%s208 + $0x10] sm:$0xf]
        %v214 = vld [vmem:[%s208 + $0x14] sm:$0xf]
        %v215 = vld [vmem:[%s208 + $0x18] sm:$0xf]
        %v216 = vld [vmem:[%s208 + $0x1c] sm:$0xf]
        %v217 = vld [vmem:[%s208 + $0x20] sm:$0xf]
        %v218 = vld [vmem:[%s208 + $0x24] sm:$0xf]
        %v219 = vld [vmem:[%s208 + $0x28] sm:$0xf]
        %v220 = vld [vmem:[%s208 + $0x2c] sm:$0xf]
        %v221 = vld [vmem:[%s208 + $0x30] sm:$0xf]
        %v222 = vld [vmem:[%s208 + $0x34] sm:$0xf]
        %v223 = vld [vmem:[%s208 + $0x38] sm:$0xf]
        %v224 = vld [vmem:[%s208 + $0x3c] sm:$0xf]
        %v241 = vunpack.c.l.b16 %v190
        %v242 = vunpack.c.l.b16 %v191
        %v243 = vunpack.c.l.b16 %v192
        %v244 = vunpack.c.l.b16 %v193
        %v245 = vunpack.c.l.b16 %v194
        %v246 = vunpack.c.l.b16 %v195
        %v247 = vunpack.c.l.b16 %v196
        %v248 = vunpack.c.l.b16 %v197
        %v249 = vunpack.c.l.b16 %v198
        %v250 = vunpack.c.l.b16 %v199
        %v251 = vunpack.c.l.b16 %v200
        %v252 = vunpack.c.l.b16 %v201
        %v253 = vunpack.c.l.b16 %v202
        %v254 = vunpack.c.l.b16 %v203
        %v255 = vunpack.c.l.b16 %v204
        %v256 = vunpack.c.l.b16 %v205
        %v257 = vpack.c.b16 %v242, %v241
        %v258 = vpack.c.b16 %v244, %v243
        %v259 = vpack.c.b16 %v246, %v245
        %v260 = vpack.c.b16 %v248, %v247
        %v261 = vpack.c.b16 %v250, %v249
        %v262 = vpack.c.b16 %v252, %v251
        %v263 = vpack.c.b16 %v254, %v253
        %v264 = vpack.c.b16 %v256, %v255
        %v289 = vunpack.c.l.b16 %v209
        %v290 = vunpack.c.l.b16 %v210
        %v291 = vunpack.c.l.b16 %v211
        %v292 = vunpack.c.l.b16 %v212
        %v293 = vunpack.c.l.b16 %v213
        %v294 = vunpack.c.l.b16 %v214
        %v295 = vunpack.c.l.b16 %v215
        %v296 = vunpack.c.l.b16 %v216
        %v297 = vunpack.c.l.b16 %v217
        %v298 = vunpack.c.l.b16 %v218
        %v299 = vunpack.c.l.b16 %v219
        %v300 = vunpack.c.l.b16 %v220
        %v301 = vunpack.c.l.b16 %v221
        %v302 = vunpack.c.l.b16 %v222
        %v303 = vunpack.c.l.b16 %v223
        %v304 = vunpack.c.l.b16 %v224
        %v305 = vpack.c.b16 %v290, %v289
        %v306 = vpack.c.b16 %v292, %v291
        %v307 = vpack.c.b16 %v294, %v293
        %v308 = vpack.c.b16 %v296, %v295
        %v309 = vpack.c.b16 %v298, %v297
        %v310 = vpack.c.b16 %v300, %v299
        %v311 = vpack.c.b16 %v302, %v301
        %v312 = vpack.c.b16 %v304, %v303
        %321 = vmatprep.subr.bf16.mxu0 0
        %322 = vmatpush1.bf16.msra.mxu0 %v305
        %323 = vmatprep.subr.bf16.mxu0 0
        %324 = vmatpush1.bf16.msra.mxu0 %v306
        %325 = vmatprep.subr.bf16.mxu0 0
        %326 = vmatpush1.bf16.msra.mxu0 %v307
        %327 = vmatprep.subr.bf16.mxu0 0
        %328 = vmatpush1.bf16.msra.mxu0 %v308
        %329 = vmatprep.subr.bf16.mxu0 0
        %330 = vmatpush1.bf16.msra.mxu0 %v309
        %331 = vmatprep.subr.bf16.mxu0 0
        %332 = vmatpush1.bf16.msra.mxu0 %v310
        %333 = vmatprep.subr.bf16.mxu0 0
        %334 = vmatpush1.bf16.msra.mxu0 %v311
        %335 = vmatprep.subr.bf16.mxu0 0
        %336 = vmatpush1.bf16.msra.mxu0 %v312
        %337 = vmatprep.subr.bf16.mxu0 0
        %338 = vmatpush1.bf16.msra.mxu0 0
        %339 = vmatprep.subr.bf16.mxu0 0
        %340 = vmatpush1.bf16.msra.mxu0 0
        %341 = vmatprep.subr.bf16.mxu0 0
        %342 = vmatpush1.bf16.msra.mxu0 0
        %343 = vmatprep.subr.bf16.mxu0 0
        %344 = vmatpush1.bf16.msra.mxu0 0
        %345 = vmatprep.subr.bf16.mxu0 0
        %346 = vmatpush1.bf16.msra.mxu0 0
        %347 = vmatprep.subr.bf16.mxu0 0
        %348 = vmatpush1.bf16.msra.mxu0 0
        %349 = vmatprep.subr.bf16.mxu0 0
        %350 = vmatpush1.bf16.msra.mxu0 0
        %351 = vmatprep.subr.bf16.mxu0 0
        %352 = vmatpush1.bf16.msra.mxu0 0
        %353 = vmatprep.mubr.bf16.mxu0 0
        %354 = vmatmul.mubr.bf16.gmra.mrb[0].mxu0 %v257
        %v355 = vpop.f32.mrb[0].mxu0
        %v356 = vadd.f32 0.0, %v355
        %v357 = vpop.f32.mrb[0].mxu0
        %v358 = vpop.f32.mrb[0].mxu0
        %v359 = vadd.f32 0.0, %v358
        %v360 = vpop.f32.mrb[0].mxu0
        %361 = vmatprep.mubr.bf16.mxu0 0
        %362 = vmatmul.mubr.bf16.gmra.mrb[0].mxu0 %v258
        %v363 = vpop.f32.mrb[0].mxu0
        %v364 = vadd.f32 0.0, %v363
        %v365 = vpop.f32.mrb[0].mxu0
        %v366 = vpop.f32.mrb[0].mxu0
        %v367 = vadd.f32 0.0, %v366
        %v368 = vpop.f32.mrb[0].mxu0
        %369 = vmatprep.mubr.bf16.mxu0 0
        %370 = vmatmul.mubr.bf16.gmra.mrb[0].mxu0 %v259
        %v371 = vpop.f32.mrb[0].mxu0
        %v372 = vadd.f32 0.0, %v371
        %v373 = vpop.f32.mrb[0].mxu0
        %v374 = vpop.f32.mrb[0].mxu0
        %v375 = vadd.f32 0.0, %v374
        %v376 = vpop.f32.mrb[0].mxu0
        %377 = vmatprep.mubr.bf16.mxu0 0
        %378 = vmatmul.mubr.bf16.gmra.mrb[0].mxu0 %v260
        %v379 = vpop.f32.mrb[0].mxu0
        %v380 = vadd.f32 0.0, %v379
        %v381 = vpop.f32.mrb[0].mxu0
        %v382 = vpop.f32.mrb[0].mxu0
        %v383 = vadd.f32 0.0, %v382
        %v384 = vpop.f32.mrb[0].mxu0
        %385 = vmatprep.mubr.bf16.mxu0 0
        %386 = vmatmul.mubr.bf16.gmra.mrb[0].mxu0 %v261
        %v387 = vpop.f32.mrb[0].mxu0
        %v388 = vadd.f32 0.0, %v387
        %v389 = vpop.f32.mrb[0].mxu0
        %v390 = vpop.f32.mrb[0].mxu0
        %v391 = vadd.f32 0.0, %v390
        %v392 = vpop.f32.mrb[0].mxu0
        %393 = vmatprep.mubr.bf16.mxu0 0
        %394 = vmatmul.mubr.bf16.gmra.mrb[0].mxu0 %v262
        %v395 = vpop.f32.mrb[0].mxu0
        %v396 = vadd.f32 0.0, %v395
        %v397 = vpop.f32.mrb[0].mxu0
        %v398 = vpop.f32.mrb[0].mxu0
        %v399 = vadd.f32 0.0, %v398
        %v400 = vpop.f32.mrb[0].mxu0
        %401 = vmatprep.mubr.bf16.mxu0 0
        %402 = vmatmul.mubr.bf16.gmra.mrb[0].mxu0 %v263
        %v403 = vpop.f32.mrb[0].mxu0
        %v404 = vadd.f32 0.0, %v403
        %v405 = vpop.f32.mrb[0].mxu0
        %v406 = vpop.f32.mrb[0].mxu0
        %v407 = vadd.f32 0.0, %v406
        %v408 = vpop.f32.mrb[0].mxu0
        %409 = vmatprep.mubr.bf16.mxu0 0
        %410 = vmatmul.mubr.bf16.gmra.mrb[0].mxu0 %v264
        %v411 = vpop.f32.mrb[0].mxu0
        %v412 = vadd.f32 0.0, %v411
        %v413 = vpop.f32.mrb[0].mxu0
        %v414 = vpop.f32.mrb[0].mxu0
        %v415 = vadd.f32 0.0, %v414
        %v416 = vpop.f32.mrb[0].mxu0
        %417 = vdwg.mxu0
        %v418 = vmul.f32 %v356, 0.5
        %v419 = vmul.f32 %v359, 0.5
        %v420 = vmul.f32 %v364, 0.5
        %v421 = vmul.f32 %v367, 0.5
        %v422 = vmul.f32 %v372, 0.5
        %v423 = vmul.f32 %v375, 0.5
        %v424 = vmul.f32 %v380, 0.5
        %v425 = vmul.f32 %v383, 0.5
        %v426 = vmul.f32 %v388, 0.5
        %v427 = vmul.f32 %v391, 0.5
        %v428 = vmul.f32 %v396, 0.5
        %v429 = vmul.f32 %v399, 0.5
        %v430 = vmul.f32 %v404, 0.5
        %v431 = vmul.f32 %v407, 0.5
        %v432 = vmul.f32 %v412, 0.5
        %v433 = vmul.f32 %v415, 0.5
        %v434 = vmul.f32 %v356, %v356
        %v435 = vmul.f32 %v359, %v359
        %v436 = vmul.f32 %v364, %v364
        %v437 = vmul.f32 %v367, %v367
        %v438 = vmul.f32 %v372, %v372
        %v439 = vmul.f32 %v375, %v375
        %v440 = vmul.f32 %v380, %v380
        %v441 = vmul.f32 %v383, %v383
        %v442 = vmul.f32 %v388, %v388
        %v443 = vmul.f32 %v391, %v391
        %v444 = vmul.f32 %v396, %v396
        %v445 = vmul.f32 %v399, %v399
        %v446 = vmul.f32 %v404, %v404
        %v447 = vmul.f32 %v407, %v407
        %v448 = vmul.f32 %v412, %v412
        %v449 = vmul.f32 %v415, %v415
        %v450 = vmul.f32 %v434, %v356
        %v451 = vmul.f32 %v435, %v359
        %v452 = vmul.f32 %v436, %v364
        %v453 = vmul.f32 %v437, %v367
        %v454 = vmul.f32 %v438, %v372
        %v455 = vmul.f32 %v439, %v375
        %v456 = vmul.f32 %v440, %v380
        %v457 = vmul.f32 %v441, %v383
        %v458 = vmul.f32 %v442, %v388
        %v459 = vmul.f32 %v443, %v391
        %v460 = vmul.f32 %v444, %v396
        %v461 = vmul.f32 %v445, %v399
        %v462 = vmul.f32 %v446, %v404
        %v463 = vmul.f32 %v447, %v407
        %v464 = vmul.f32 %v448, %v412
        %v465 = vmul.f32 %v449, %v415
        %v466 = vmul.f32 %v450, 0.044715
        %v467 = vmul.f32 %v451, 0.044715
        %v468 = vmul.f32 %v452, 0.044715
        %v469 = vmul.f32 %v453, 0.044715
        %v470 = vmul.f32 %v454, 0.044715
        %v471 = vmul.f32 %v455, 0.044715
        %v472 = vmul.f32 %v456, 0.044715
        %v473 = vmul.f32 %v457, 0.044715
        %v474 = vmul.f32 %v458, 0.044715
        %v475 = vmul.f32 %v459, 0.044715
        %v476 = vmul.f32 %v460, 0.044715
        %v477 = vmul.f32 %v461, 0.044715
        %v478 = vmul.f32 %v462, 0.044715
        %v479 = vmul.f32 %v463, 0.044715
        %v480 = vmul.f32 %v464, 0.044715
        %v481 = vmul.f32 %v465, 0.044715
        %v482 = vadd.f32 %v356, %v466
        %v483 = vadd.f32 %v359, %v467
        %v484 = vadd.f32 %v364, %v468
        %v485 = vadd.f32 %v367, %v469
        %v486 = vadd.f32 %v372, %v470
        %v487 = vadd.f32 %v375, %v471
        %v488 = vadd.f32 %v380, %v472
        %v489 = vadd.f32 %v383, %v473
        %v490 = vadd.f32 %v388, %v474
        %v491 = vadd.f32 %v391, %v475
        %v492 = vadd.f32 %v396, %v476
        %v493 = vadd.f32 %v399, %v477
        %v494 = vadd.f32 %v404, %v478
        %v495 = vadd.f32 %v407, %v479
        %v496 = vadd.f32 %v412, %v480
        %v497 = vadd.f32 %v415, %v481
        %v498 = vmul.f32 %v482, 0.7978846
        %v499 = vmul.f32 %v483, 0.7978846
        %v500 = vmul.f32 %v484, 0.7978846
        %v501 = vmul.f32 %v485, 0.7978846
        %v502 = vmul.f32 %v486, 0.7978846
        %v503 = vmul.f32 %v487, 0.7978846
        %v504 = vmul.f32 %v488, 0.7978846
        %v505 = vmul.f32 %v489, 0.7978846
        %v506 = vmul.f32 %v490, 0.7978846
        %v507 = vmul.f32 %v491, 0.7978846
        %v508 = vmul.f32 %v492, 0.7978846
        %v509 = vmul.f32 %v493, 0.7978846
        %v510 = vmul.f32 %v494, 0.7978846
        %v511 = vmul.f32 %v495, 0.7978846
        %v512 = vmul.f32 %v496, 0.7978846
        %v513 = vmul.f32 %v497, 0.7978846
        %v514 = vtanh.pop %v498
        %v515 = vtanh.pop %v499
        %v516 = vtanh.pop %v500
        %v517 = vtanh.pop %v501
        %v518 = vtanh.pop %v502
        %v519 = vtanh.pop %v503
        %v520 = vtanh.pop %v504
        %v521 = vtanh.pop %v505
        %v522 = vtanh.pop %v506
        %v523 = vtanh.pop %v507
        %v524 = vtanh.pop %v508
        %v525 = vtanh.pop %v509
        %v526 = vtanh.pop %v510
        %v527 = vtanh.pop %v511
        %v528 = vtanh.pop %v512
        %v529 = vtanh.pop %v513
        %v530 = vadd.f32 %v514, 1.0
        %v531 = vadd.f32 %v515, 1.0
        %v532 = vadd.f32 %v516, 1.0
        %v533 = vadd.f32 %v517, 1.0
        %v534 = vadd.f32 %v518, 1.0
        %v535 = vadd.f32 %v519, 1.0
        %v536 = vadd.f32 %v520, 1.0
        %v537 = vadd.f32 %v521, 1.0
        %v538 = vadd.f32 %v522, 1.0
        %v539 = vadd.f32 %v523, 1.0
        %v540 = vadd.f32 %v524, 1.0
        %v541 = vadd.f32 %v525, 1.0
        %v542 = vadd.f32 %v526, 1.0
        %v543 = vadd.f32 %v527, 1.0
        %v544 = vadd.f32 %v528, 1.0
        %v545 = vadd.f32 %v529, 1.0
        %v546 = vmul.f32 %v418, %v530
        %v547 = vmul.f32 %v419, %v531
        %v548 = vmul.f32 %v420, %v532
        %v549 = vmul.f32 %v421, %v533
        %v550 = vmul.f32 %v422, %v534
        %v551 = vmul.f32 %v423, %v535
        %v552 = vmul.f32 %v424, %v536
        %v553 = vmul.f32 %v425, %v537
        %v554 = vmul.f32 %v426, %v538
        %v555 = vmul.f32 %v427, %v539
        %v556 = vmul.f32 %v428, %v540
        %v557 = vmul.f32 %v429, %v541
        %v558 = vmul.f32 %v430, %v542
        %v559 = vmul.f32 %v431, %v543
        %v560 = vmul.f32 %v432, %v544
        %v561 = vmul.f32 %v433, %v545
        %v562 = vpack.c.bf16 %v547, %v546
        %v563 = vpack.c.bf16 %v549, %v548
        %v564 = vpack.c.bf16 %v551, %v550
        %v565 = vpack.c.bf16 %v553, %v552
        %v566 = vpack.c.bf16 %v555, %v554
        %v567 = vpack.c.bf16 %v557, %v556
        %v568 = vpack.c.bf16 %v559, %v558
        %v569 = vpack.c.bf16 %v561, %v560
        %s570 = smul.addr %s206, 4
        %s571 = scalar_lea.vmem %s4, %s570
        %v572 = vld [vmem:[%s571] sm:$0xf]
        %v573 = vld [vmem:[%s571 + $0x4] sm:$0xf]
        %v574 = vld [vmem:[%s571 + $0x8] sm:$0xf]
        %v575 = vld [vmem:[%s571 + $0xc] sm:$0xf]
        %v576 = vld [vmem:[%s571 + $0x10] sm:$0xf]
        %v577 = vld [vmem:[%s571 + $0x14] sm:$0xf]
        %v578 = vld [vmem:[%s571 + $0x18] sm:$0xf]
        %v579 = vld [vmem:[%s571 + $0x1c] sm:$0xf]
        %v580 = vld [vmem:[%s571 + $0x20] sm:$0xf]
        %v581 = vld [vmem:[%s571 + $0x24] sm:$0xf]
        %v582 = vld [vmem:[%s571 + $0x28] sm:$0xf]
        %v583 = vld [vmem:[%s571 + $0x2c] sm:$0xf]
        %v584 = vld [vmem:[%s571 + $0x30] sm:$0xf]
        %v585 = vld [vmem:[%s571 + $0x34] sm:$0xf]
        %v586 = vld [vmem:[%s571 + $0x38] sm:$0xf]
        %v587 = vld [vmem:[%s571 + $0x3c] sm:$0xf]
        %v604 = vunpack.c.l.b16 %v572
        %v605 = vunpack.c.l.b16 %v573
        %v606 = vunpack.c.l.b16 %v574
        %v607 = vunpack.c.l.b16 %v575
        %v608 = vunpack.c.l.b16 %v576
        %v609 = vunpack.c.l.b16 %v577
        %v610 = vunpack.c.l.b16 %v578
        %v611 = vunpack.c.l.b16 %v579
        %v612 = vunpack.c.l.b16 %v580
        %v613 = vunpack.c.l.b16 %v581
        %v614 = vunpack.c.l.b16 %v582
        %v615 = vunpack.c.l.b16 %v583
        %v616 = vunpack.c.l.b16 %v584
        %v617 = vunpack.c.l.b16 %v585
        %v618 = vunpack.c.l.b16 %v586
        %v619 = vunpack.c.l.b16 %v587
        %v620 = vpack.c.b16 %v605, %v604
        %v621 = vpack.c.b16 %v607, %v606
        %v622 = vpack.c.b16 %v609, %v608
        %v623 = vpack.c.b16 %v611, %v610
        %v624 = vpack.c.b16 %v613, %v612
        %v625 = vpack.c.b16 %v615, %v614
        %v626 = vpack.c.b16 %v617, %v616
        %v627 = vpack.c.b16 %v619, %v618
        %636 = vmatprep.subr.bf16.mxu0 0
        %637 = vmatpush1.bf16.msra.mxu0 %v620
        %638 = vmatprep.subr.bf16.mxu0 0
        %639 = vmatpush1.bf16.msra.mxu0 %v621
        %640 = vmatprep.subr.bf16.mxu0 0
        %641 = vmatpush1.bf16.msra.mxu0 %v622
        %642 = vmatprep.subr.bf16.mxu0 0
        %643 = vmatpush1.bf16.msra.mxu0 %v623
        %644 = vmatprep.subr.bf16.mxu0 0
        %645 = vmatpush1.bf16.msra.mxu0 %v624
        %646 = vmatprep.subr.bf16.mxu0 0
        %647 = vmatpush1.bf16.msra.mxu0 %v625
        %648 = vmatprep.subr.bf16.mxu0 0
        %649 = vmatpush1.bf16.msra.mxu0 %v626
        %650 = vmatprep.subr.bf16.mxu0 0
        %651 = vmatpush1.bf16.msra.mxu0 %v627
        %652 = vmatprep.subr.bf16.mxu0 0
        %653 = vmatpush1.bf16.msra.mxu0 0
        %654 = vmatprep.subr.bf16.mxu0 0
        %655 = vmatpush1.bf16.msra.mxu0 0
        %656 = vmatprep.subr.bf16.mxu0 0
        %657 = vmatpush1.bf16.msra.mxu0 0
        %658 = vmatprep.subr.bf16.mxu0 0
        %659 = vmatpush1.bf16.msra.mxu0 0
        %660 = vmatprep.subr.bf16.mxu0 0
        %661 = vmatpush1.bf16.msra.mxu0 0
        %662 = vmatprep.subr.bf16.mxu0 0
        %663 = vmatpush1.bf16.msra.mxu0 0
        %664 = vmatprep.subr.bf16.mxu0 0
        %665 = vmatpush1.bf16.msra.mxu0 0
        %666 = vmatprep.subr.bf16.mxu0 0
        %667 = vmatpush1.bf16.msra.mxu0 0
        %668 = vmatprep.mubr.bf16.mxu0 0
        %669 = vmatmul.mubr.bf16.gmra.mrb[0].mxu0 %v562
        %v670 = vpop.f32.mrb[0].mxu0
        %v671 = vadd.f32 0.0, %v670
        %v672 = vpop.f32.mrb[0].mxu0
        %v673 = vpop.f32.mrb[0].mxu0
        %v674 = vadd.f32 0.0, %v673
        %v675 = vpop.f32.mrb[0].mxu0
        %676 = vmatprep.mubr.bf16.mxu0 0
        %677 = vmatmul.mubr.bf16.gmra.mrb[0].mxu0 %v563
        %v678 = vpop.f32.mrb[0].mxu0
        %v679 = vadd.f32 0.0, %v678
        %v680 = vpop.f32.mrb[0].mxu0
        %v681 = vpop.f32.mrb[0].mxu0
        %v682 = vadd.f32 0.0, %v681
        %v683 = vpop.f32.mrb[0].mxu0
        %684 = vmatprep.mubr.bf16.mxu0 0
        %685 = vmatmul.mubr.bf16.gmra.mrb[0].mxu0 %v564
        %v686 = vpop.f32.mrb[0].mxu0
        %v687 = vadd.f32 0.0, %v686
        %v688 = vpop.f32.mrb[0].mxu0
        %v689 = vpop.f32.mrb[0].mxu0
        %v690 = vadd.f32 0.0, %v689
        %v691 = vpop.f32.mrb[0].mxu0
        %692 = vmatprep.mubr.bf16.mxu0 0
        %693 = vmatmul.mubr.bf16.gmra.mrb[0].mxu0 %v565
        %v694 = vpop.f32.mrb[0].mxu0
        %v695 = vadd.f32 0.0, %v694
        %v696 = vpop.f32.mrb[0].mxu0
        %v697 = vpop.f32.mrb[0].mxu0
        %v698 = vadd.f32 0.0, %v697
        %v699 = vpop.f32.mrb[0].mxu0
        %700 = vmatprep.mubr.bf16.mxu0 0
        %701 = vmatmul.mubr.bf16.gmra.mrb[0].mxu0 %v566
        %v702 = vpop.f32.mrb[0].mxu0
        %v703 = vadd.f32 0.0, %v702
        %v704 = vpop.f32.mrb[0].mxu0
        %v705 = vpop.f32.mrb[0].mxu0
        %v706 = vadd.f32 0.0, %v705
        %v707 = vpop.f32.mrb[0].mxu0
        %708 = vmatprep.mubr.bf16.mxu0 0
        %709 = vmatmul.mubr.bf16.gmra.mrb[0].mxu0 %v567
        %v710 = vpop.f32.mrb[0].mxu0
        %v711 = vadd.f32 0.0, %v710
        %v712 = vpop.f32.mrb[0].mxu0
        %v713 = vpop.f32.mrb[0].mxu0
        %v714 = vadd.f32 0.0, %v713
        %v715 = vpop.f32.mrb[0].mxu0
        %716 = vmatprep.mubr.bf16.mxu0 0
        %717 = vmatmul.mubr.bf16.gmra.mrb[0].mxu0 %v568
        %v718 = vpop.f32.mrb[0].mxu0
        %v719 = vadd.f32 0.0, %v718
        %v720 = vpop.f32.mrb[0].mxu0
        %v721 = vpop.f32.mrb[0].mxu0
        %v722 = vadd.f32 0.0, %v721
        %v723 = vpop.f32.mrb[0].mxu0
        %724 = vmatprep.mubr.bf16.mxu0 0
        %725 = vmatmul.mubr.bf16.gmra.mrb[0].mxu0 %v569
        %v726 = vpop.f32.mrb[0].mxu0
        %v727 = vadd.f32 0.0, %v726
        %v728 = vpop.f32.mrb[0].mxu0
        %v729 = vpop.f32.mrb[0].mxu0
        %v730 = vadd.f32 0.0, %v729
        %v731 = vpop.f32.mrb[0].mxu0
        %732 = vdwg.mxu0
        %733 = vst [vmem:[%s181] sm:$0xff] %v671
        %734 = vst [vmem:[%s181 + $0x8] sm:$0xff] %v674
        %735 = vst [vmem:[%s181 + $0x10] sm:$0xff] %v679
        %736 = vst [vmem:[%s181 + $0x18] sm:$0xff] %v682
        %737 = vst [vmem:[%s181 + $0x20] sm:$0xff] %v687
        %738 = vst [vmem:[%s181 + $0x28] sm:$0xff] %v690
        %739 = vst [vmem:[%s181 + $0x30] sm:$0xff] %v695
        %740 = vst [vmem:[%s181 + $0x38] sm:$0xff] %v698
        %741 = vst [vmem:[%s181 + $0x40] sm:$0xff] %v703
        %742 = vst [vmem:[%s181 + $0x48] sm:$0xff] %v706
        %743 = vst [vmem:[%s181 + $0x50] sm:$0xff] %v711
        %744 = vst [vmem:[%s181 + $0x58] sm:$0xff] %v714
        %745 = vst [vmem:[%s181 + $0x60] sm:$0xff] %v719
        %746 = vst [vmem:[%s181 + $0x68] sm:$0xff] %v722
        %747 = vst [vmem:[%s181 + $0x70] sm:$0xff] %v727
        %748 = vst [vmem:[%s181 + $0x78] sm:$0xff] %v730
      $region36: #{grouped_batched_experts_forward.1} parent=31 // pred_fallthru
        _
      %s749 = smul.u32 16, %s23
      %p750 = scmp.lt.s32.totalorder %s749, 79
      %s751 = scalar_select %p750, %s749, 79
      %s752 = smul.addr %s751, 8
      %s753 = scalar_lea.vmem %s5, %s752
      // Predicated region
      $region37: #{grouped_batched_experts_forward.1} parent=31 // pred_check
        %p754 = pneg %p109
      $region38: #{grouped_batched_experts_forward.1} parent=31 // pred_check_branch
        %756 = sbr.rel (%p754) target = $region40
      $region39: #{grouped_batched_experts_forward.1} parent=31 // pred_region
        %s757 = smul.u32 16, %s23
      $region40: #{grouped_batched_experts_forward.1} parent=31 // pred_fallthru
        _
    $region32: #{grouped_batched_experts_forward.1} parent=5 // pred_fallthru
      _
    %p758 = scmp.le.s32.totalorder 2, %s18
    // Predicated region
    $region41: #{grouped_batched_experts_forward.1} parent=5 // pred_check
      %p759 = pneg %p758
    $region42: #{grouped_batched_experts_forward.1} parent=5 // pred_check_branch
      %761 = sbr.rel (%p759) target = $region44
    $region43: #{grouped_batched_experts_forward.1} parent=5 // pred_region
      %s762 = ssub.s32 %s18, 2
      // Predicated region
      $region45: #{grouped_batched_experts_forward.1} parent=43 // pred_check
        %p763 = pneg %p115
      $region46: #{grouped_batched_experts_forward.1} parent=43 // pred_check_branch
        %765 = sbr.rel (%p763) target = $region48
      $region47: #{grouped_batched_experts_forward.1} parent=43 // pred_region
        %s766 = smul.u32 16, %s24
        %p767 = scmp.lt.s32.totalorder %s766, 79
        %s768 = scalar_select %p767, %s766, 79
        %s769 = smul.addr %s768, 8
        %s770 = scalar_lea.vmem %s5, %s769
      $region48: #{grouped_batched_experts_forward.1} parent=43 // pred_fallthru
        _
    $region44: #{grouped_batched_experts_forward.1} parent=5 // pred_fallthru
      _
  $region6: #{grouped_batched_experts_forward.1} parent=0 // loop_footer
    %s22 = sadd.s32 1, %s18
  $region7: #{grouped_batched_experts_forward.1} parent=0 // loop_footer_branch
    %17 = sbr.rel target = $region3
  $region8: #{grouped_batched_experts_forward.1} parent=0 // loop_exit
    _

</llo_original>
